<compile_context>
chip_gen: v5e
topology: v5e:2x2
jax: 0.10.0
libtpu: 0.0.40
codegen_flags: <defaults>
</compile_context>

<pallas_src>
import jax
import jax.numpy as jnp
from jax import lax
from jax.experimental import pallas as pl
from jax.experimental.pallas import tpu as pltpu

EPS = 1e-6           # matches SemanticLoss.eps
NORM_EPS = 1e-12     # matches F.normalize default eps


def _semantic_loss_kernel(center_ref, ft_ref, prior_ref, out_ref):
    """center_ref: [C, D], ft_ref: [TN, D], prior_ref: [1, C], out_ref: (1,1)."""
    i = pl.program_id(0)

    @pl.when(i == 0)
    def _():
        out_ref[...] = jnp.zeros_like(out_ref)

    cs = center_ref[...].astype(jnp.float32)     # [C, D]
    ft = ft_ref[...].astype(jnp.float32)         # [TN, D]
    prior = prior_ref[...].astype(jnp.float32)   # [1, C]

    # sim[n, c] = <f_t[n], center_s[c]> : contract last dims of both operands
    # (no materialized transpose), single MXU pass, scores land as [TN, C].
    sim = lax.dot_general(
        ft, cs,
        dimension_numbers=(((1,), (1,)), ((), ())),
        preferred_element_type=jnp.float32,
    )  # [TN, C]

    # new_logits = log(prior + eps) + sim   (prior broadcast over samples)
    logits = sim + jnp.log(prior + EPS)          # [TN, C]

    # softmax over the class axis == last (lane) axis.
    m = jnp.max(logits, axis=-1, keepdims=True)              # [TN, 1]
    e = jnp.exp(logits - m)                                   # [TN, C]
    denom = jnp.sum(e, axis=-1, keepdims=True)                # [TN, 1]
    s_dist = e * pl.reciprocal(denom, approx=True)            # [TN, C]

    # pairwise cosine distance reuses `sim`: L2-normalization is a per-row
    # scale, so  cs_n @ ft_n.T == sim * (1/||ft||) * (1/||cs||).
    # rsqrt(max(sumsq, eps^2)) == 1 / max(norm, eps)  (F.normalize semantics).
    inv_ft = lax.rsqrt(
        jnp.maximum(jnp.sum(ft * ft, axis=-1, keepdims=True),
                    NORM_EPS * NORM_EPS))                     # [TN, 1]
    inv_cs = lax.rsqrt(
        jnp.maximum(jnp.sum(cs * cs, axis=-1), NORM_EPS * NORM_EPS))  # [C]
    cost = 1.0 - sim * inv_ft * inv_cs[None, :]               # [TN, C]

    # loss contribution of this tile: sum over classes (lane reduce), then
    # over samples (sublane reduce); accumulate into the resident output.
    tile_per_sample = jnp.sum(cost * s_dist, axis=-1, keepdims=True)  # [TN, 1]
    out_ref[...] += jnp.sum(tile_per_sample, axis=0, keepdims=True)   # (1, 1)


def _pick_n_tile(n, max_tile=512):
    """Largest tile <= max_tile that divides n and satisfies the sublane rule."""
    if n <= max_tile:
        return n
    t = max_tile - (max_tile % 8)
    while t >= 8:
        if n % t == 0:
            return t
        t -= 8
    return n  # fallback: single full block


def semantic_loss(center_s, f_t, prior):
    """center_s: [C, D], f_t: [N, D], prior: [C, 1] -> scalar f32 loss."""
    C, D = center_s.shape
    N, Df = f_t.shape
    assert Df == D, (center_s.shape, f_t.shape)

    # Layout plumbing only: present the prior lane-dense as a [1, C] row.
    prior_row = prior.reshape(1, C)

    tn = _pick_n_tile(N)
    grid = (N // tn,)

    acc = pl.pallas_call(
        _semantic_loss_kernel,
        out_shape=jax.ShapeDtypeStruct((1, 1), jnp.float32),
        grid_spec=pltpu.PrefetchScalarGridSpec(
            num_scalar_prefetch=0,
            grid=grid,
            in_specs=[
                pl.BlockSpec((C, D), lambda i: (0, 0)),    # centers: fetched once
                pl.BlockSpec((tn, D), lambda i: (i, 0)),   # f_t: tiled over N
                pl.BlockSpec((1, C), lambda i: (0, 0)),    # prior row: fetched once
            ],
            out_specs=pl.BlockSpec((1, 1), lambda i: (0, 0)),  # resident accumulator
        ),
        compiler_params=pltpu.CompilerParams(
            dimension_semantics=("arbitrary",),            # accumulation axis
            vmem_limit_bytes=32 * 1024 * 1024,
        ),
    )(center_s, f_t, prior_row)

    # Mean over the TRUE sample count (kernel accumulates the raw sum).
    return acc[0, 0] / jnp.float32(N)


def semantic_loss_ref(center_s, f_t, prior):
    """Pure-JAX reference mirroring the PyTorch module."""
    sim = center_s @ f_t.T
    logits = jnp.log(prior + EPS) + sim
    s_dist = jax.nn.softmax(logits, axis=0)
    cs_n = center_s / jnp.maximum(
        jnp.linalg.norm(center_s, axis=1, keepdims=True), NORM_EPS)
    ft_n = f_t / jnp.maximum(
        jnp.linalg.norm(f_t, axis=1, keepdims=True), NORM_EPS)
    cost = 1.0 - cs_n @ ft_n.T
    return (cost * s_dist).sum(0).mean()


if __name__ == "__main__":
    num_classes = 4   # C
    feat_dim = 32     # D
    num_samples = 8   # N (batch of target features)

    key = jax.random.PRNGKey(0)
    k1, k2 = jax.random.split(key)
    center_s = jax.random.normal(k1, (num_classes, feat_dim), dtype=jnp.float32)
    f_t = jax.random.normal(k2, (num_samples, feat_dim), dtype=jnp.float32)

    # prior initialized exactly as in __init__: ones * (1/num_classes)
    prior = jnp.ones((num_classes, 1), dtype=jnp.float32) / num_classes

    loss = semantic_loss(center_s, f_t, prior)
    jax.block_until_ready(loss)

    ref = semantic_loss_ref(center_s, f_t, prior)
    # Tolerance relaxed vs 1e-5 because pl.reciprocal(approx=True) is an
    # EUP approximation (~1e-4 rel) of the softmax denominator.
    assert jnp.allclose(loss, ref, rtol=2e-3, atol=2e-3), (loss, ref)

    print("KERNEL_OK")
</pallas_src>

<mosaic_0001>
module attributes {stable_mosaic.version = 11 : i64} {
  func.func @_semantic_loss_kernel(%arg0: i32, %arg1: memref<4x32xf32, #tpu.memory_space<vmem>>, %arg2: memref<8x32xf32, #tpu.memory_space<vmem>>, %arg3: memref<1x4xf32, #tpu.memory_space<vmem>>, %arg4: memref<1x1xf32, #tpu.memory_space<vmem>>) attributes {dimension_semantics = [#tpu.dimension_semantics<arbitrary>], iteration_bounds = array<i64: 1>, scalar_prefetch = 0 : i64, scratch_operands = 0 : i64, tpu.core_type = #tpu.core_type<tc>, window_params = [{pipeline_mode = #tpu.pipeline_mode<synchronous>, transform_indices = @transform_0, window_bounds = array<i64: 4, 32>}, {transform_indices = @transform_1, window_bounds = array<i64: 8, 32>}, {pipeline_mode = #tpu.pipeline_mode<synchronous>, transform_indices = @transform_2, window_bounds = array<i64: 1, 4>}, {pipeline_mode = #tpu.pipeline_mode<synchronous>, transform_indices = @transform_3, window_bounds = array<i64: 1, 1>}]} {
    %c0_i32 = arith.constant 0 : i32
    %0 = arith.cmpi eq, %arg0, %c0_i32 : i32
    %1 = arith.extui %0 : i1 to i32
    %c0_i32_0 = arith.constant 0 : i32
    %2 = arith.cmpi ne, %1, %c0_i32_0 : i32
    scf.if %2 {
      %cst_20 = arith.constant 0.000000e+00 : f32
      %48 = vector.broadcast %cst_20 : f32 to vector<1x1xf32>
      %c0_21 = arith.constant 0 : index
      %c0_22 = arith.constant 0 : index
      %49 = vector.load %arg4[%c0_21, %c0_22] : memref<1x1xf32, #tpu.memory_space<vmem>>, vector<1x1xf32>
      tpu.vector_store %arg4[%c0_21, %c0_22], %48 {strides = array<i32>} : memref<1x1xf32, #tpu.memory_space<vmem>>, vector<1x1xf32>,
    } else {
    }
    %c0 = arith.constant 0 : index
    %c0_1 = arith.constant 0 : index
    %3 = vector.load %arg1[%c0, %c0_1] : memref<4x32xf32, #tpu.memory_space<vmem>>, vector<4x32xf32>
    %c0_2 = arith.constant 0 : index
    %c0_3 = arith.constant 0 : index
    %4 = vector.load %arg2[%c0_2, %c0_3] : memref<8x32xf32, #tpu.memory_space<vmem>>, vector<8x32xf32>
    %c0_4 = arith.constant 0 : index
    %c0_5 = arith.constant 0 : index
    %5 = vector.load %arg3[%c0_4, %c0_5] : memref<1x4xf32, #tpu.memory_space<vmem>>, vector<1x4xf32>
    %cst = arith.constant dense<0.000000e+00> : vector<8x4xf32>
    %6 = tpu.matmul %4, %3, %cst {dimension_numbers = #tpu.dot_dimension_numbers<[1], [1], [0], [0], [0, 0, 1, 0], [], []>} : vector<8x32xf32>, vector<4x32xf32>, vector<8x4xf32> -> vector<8x4xf32>
    %cst_6 = arith.constant 9.99999997E-7 : f32
    %7 = vector.broadcast %cst_6 : f32 to vector<1x4xf32>
    %8 = arith.addf %5, %7 : vector<1x4xf32>
    %9 = math.log %8 : vector<1x4xf32>
    %10 = vector.broadcast %9 : vector<1x4xf32> to vector<8x4xf32>
    %11 = arith.addf %6, %10 : vector<8x4xf32>
    %cst_7 = arith.constant dense<0xFF800000> : vector<8xf32>
    %12 = vector.multi_reduction <maximumf>, %11, %cst_7 [1] : vector<8x4xf32> to vector<8xf32>
    %13 = vector.shape_cast %12 : vector<8xf32> to vector<8x1xf32>
    %14 = vector.broadcast %13 : vector<8x1xf32> to vector<8x4xf32>
    %15 = arith.subf %11, %14 : vector<8x4xf32>
    %16 = math.exp %15 : vector<8x4xf32>
    %cst_8 = arith.constant dense<0.000000e+00> : vector<8xf32>
    %17 = vector.multi_reduction <add>, %16, %cst_8 [1] : vector<8x4xf32> to vector<8xf32>
    %18 = vector.shape_cast %17 : vector<8xf32> to vector<8x1xf32>
    %19 = tpu.reciprocal %18 {approx = true} : vector<8x1xf32> -> vector<8x1xf32>
    %20 = vector.broadcast %19 : vector<8x1xf32> to vector<8x4xf32>
    %21 = arith.mulf %16, %20 : vector<8x4xf32>
    %22 = arith.mulf %4, %4 : vector<8x32xf32>
    %cst_9 = arith.constant dense<0.000000e+00> : vector<8xf32>
    %23 = vector.multi_reduction <add>, %22, %cst_9 [1] : vector<8x32xf32> to vector<8xf32>
    %24 = vector.shape_cast %23 : vector<8xf32> to vector<8x1xf32>
    %cst_10 = arith.constant 1.000000e-24 : f32
    %25 = vector.broadcast %cst_10 : f32 to vector<8x1xf32>
    %26 = arith.maximumf %24, %25 : vector<8x1xf32>
    %27 = math.rsqrt %26 : vector<8x1xf32>
    %28 = arith.mulf %3, %3 : vector<4x32xf32>
    %cst_11 = arith.constant dense<0.000000e+00> : vector<4xf32>
    %29 = vector.multi_reduction <add>, %28, %cst_11 [1] : vector<4x32xf32> to vector<4xf32>
    %cst_12 = arith.constant 1.000000e-24 : f32
    %30 = vector.broadcast %cst_12 : f32 to vector<4xf32>
    %31 = arith.maximumf %29, %30 : vector<4xf32>
    %32 = math.rsqrt %31 : vector<4xf32>
    %33 = vector.broadcast %27 : vector<8x1xf32> to vector<8x4xf32>
    %34 = arith.mulf %6, %33 : vector<8x4xf32>
    %35 = vector.shape_cast %32 : vector<4xf32> to vector<1x4xf32>
    %36 = vector.broadcast %35 : vector<1x4xf32> to vector<8x4xf32>
    %37 = arith.mulf %34, %36 : vector<8x4xf32>
    %cst_13 = arith.constant 1.000000e+00 : f32
    %38 = vector.broadcast %cst_13 : f32 to vector<8x4xf32>
    %39 = arith.subf %38, %37 : vector<8x4xf32>
    %40 = arith.mulf %39, %21 : vector<8x4xf32>
    %cst_14 = arith.constant dense<0.000000e+00> : vector<8xf32>
    %41 = vector.multi_reduction <add>, %40, %cst_14 [1] : vector<8x4xf32> to vector<8xf32>
    %42 = vector.shape_cast %41 : vector<8xf32> to vector<8x1xf32>
    %c0_15 = arith.constant 0 : index
    %c0_16 = arith.constant 0 : index
    %43 = vector.load %arg4[%c0_15, %c0_16] : memref<1x1xf32, #tpu.memory_space<vmem>>, vector<1x1xf32>
    %cst_17 = arith.constant dense<0.000000e+00> : vector<1xf32>
    %44 = vector.multi_reduction <add>, %42, %cst_17 [0] : vector<8x1xf32> to vector<1xf32>
    %45 = vector.shape_cast %44 : vector<1xf32> to vector<1x1xf32>
    %46 = arith.addf %43, %45 : vector<1x1xf32>
    %c0_18 = arith.constant 0 : index
    %c0_19 = arith.constant 0 : index
    %47 = vector.load %arg4[%c0_18, %c0_19] : memref<1x1xf32, #tpu.memory_space<vmem>>, vector<1x1xf32>
    tpu.vector_store %arg4[%c0_18, %c0_19], %46 {strides = array<i32>} : memref<1x1xf32, #tpu.memory_space<vmem>>, vector<1x1xf32>,
    return
  }
  func.func @transform_0(%arg0: i32) -> (i32, i32) {
    %c0_i32 = arith.constant 0 : i32
    %c0_i32_0 = arith.constant 0 : i32
    %c0_i32_1 = arith.constant 0 : i32
    return %c0_i32, %c0_i32_0 : i32, i32
  }
  func.func @transform_1(%arg0: i32) -> (i32, i32) {
    %c0_i32 = arith.constant 0 : i32
    %c0_i32_0 = arith.constant 0 : i32
    return %arg0, %c0_i32 : i32, i32
  }
  func.func @transform_2(%arg0: i32) -> (i32, i32) {
    %c0_i32 = arith.constant 0 : i32
    %c0_i32_0 = arith.constant 0 : i32
    %c0_i32_1 = arith.constant 0 : i32
    return %c0_i32, %c0_i32_0 : i32, i32
  }
  func.func @transform_3(%arg0: i32) -> (i32, i32) {
    %c0_i32 = arith.constant 0 : i32
    %c0_i32_0 = arith.constant 0 : i32
    %c0_i32_1 = arith.constant 0 : i32
    return %c0_i32, %c0_i32_0 : i32, i32
  }
}

</mosaic_0001>

<llo_original>
// kernel: tpu_custom_call.1
$region0: #{tpu_custom_call.1}
  #allocation0 [shape = 'u32[]', space=smem, size = 0x4, offset = 0x4, fixed_abs, tag = 'smem constant byte address 0x4 - core index']
  #allocation1 [shape = 'u32[72,128]{1,0:T(1,128)}', space=vmem, size = 0x9000, scoped, tag = 'internal scratch']
  %s0 = inlined_call_operand.hbm [shape: f32[4,32], index: 0, kind: input, shape index: {}]
  %s1 = inlined_call_operand.hbm [shape: f32[8,32], index: 1, kind: input, shape index: {}]
  %s2 = inlined_call_operand.vmem [shape: f32[1,4], index: 2, kind: input, shape index: {}]
  %s3 = inlined_call_operand.hbm [shape: f32[1,1], index: 3, kind: output, shape index: {}]
  %s4 = sld [smem:[#allocation0]]
  $region34: #{tpu_custom_call.1} parent=0
    _
  %s6 = ssub.s32 1, %s4
  %s7 = scalar_select 0, %s6, %s4
  $region1: #{tpu_custom_call.1} parent=0
    #allocation2 [shape = 'u8[2048]{0}', space=vmem, size = 0x800, scoped, tag = 'input window, operand 0, single buffered']
    #allocation3 [shape = 's32[1]{0}', space=sflag, size = 0x4, scoped, tag = 'scoped memory for tpu_custom_call.1']
    #allocation4 [shape = 's32[1]{0}', space=sflag, size = 0x4, scoped, tag = 'scoped memory for tpu_custom_call.1']
    #allocation5 [shape = 'u8[4096]{0}', space=vmem, size = 0x1000, scoped, tag = 'input window, operand 1, single buffered']
    #allocation6 [shape = 's32[1]{0}', space=sflag, size = 0x4, scoped, tag = 'scoped memory for tpu_custom_call.1']
    #allocation7 [shape = 'u8[512]{0}', space=vmem, size = 0x400, scoped, tag = 'output window, operand 0, single buffered']
    %8 = vsyncpa [#allocation3], 0
    %9 = vsyncpa [#allocation6], 0
    %10 = vsyncpa [#allocation4], 0
    // Predicated region
    $region2: #{tpu_custom_call.1} parent=1 // pred_check
      _
    $region3: #{tpu_custom_call.1} parent=1 // pred_check_branch
      %12 = sbr.rel (0) target = $region5
    $region4: #{tpu_custom_call.1} parent=1 // pred_region
      %14 = vsyncadd [#allocation3], 0
      %s16 = sshll.u32 %s0, 4
      %s17 = int_to_ptr.hbm [resolvable:$true] %s16
      %s18 = sshll.u32 [#allocation2], 4
      %s19 = int_to_ptr.vmem [resolvable:$true] %s18
      %21 = dma.hbm_to_vmem [thread:$0]  %s17, 64, %s19, [#allocation3]
    $region5: #{tpu_custom_call.1} parent=1 // pred_fallthru
      _
    // Predicated region
    $region6: #{tpu_custom_call.1} parent=1 // pred_check
      _
    $region7: #{tpu_custom_call.1} parent=1 // pred_check_branch
      %23 = sbr.rel (0) target = $region9
    $region8: #{tpu_custom_call.1} parent=1 // pred_region
      %25 = vsyncadd [#allocation6], 0
      %s27 = sshll.u32 %s1, 4
      %s28 = int_to_ptr.hbm [resolvable:$true] %s27
      %s29 = sshll.u32 [#allocation5], 4
      %s30 = int_to_ptr.vmem [resolvable:$true] %s29
      %32 = dma.hbm_to_vmem [thread:$0]  %s28, 128, %s30, [#allocation6]
    $region9: #{tpu_custom_call.1} parent=1 // pred_fallthru
      _
    // Predicated region
    $region10: #{tpu_custom_call.1} parent=1 // pred_check
      _
    $region11: #{tpu_custom_call.1} parent=1 // pred_check_branch
      %34 = sbr.rel (0) target = $region13
    $region12: #{tpu_custom_call.1} parent=1 // pred_region
      _
    $region13: #{tpu_custom_call.1} parent=1 // pred_fallthru
      _
    // Predicated region
    $region14: #{tpu_custom_call.1} parent=1 // pred_check
      _
    $region15: #{tpu_custom_call.1} parent=1 // pred_check_branch
      %36 = sbr.rel (0) target = $region17
    $region16: #{tpu_custom_call.1} parent=1 // pred_region
      %38 = dma.done [#allocation3], 64
    $region17: #{tpu_custom_call.1} parent=1 // pred_fallthru
      _
    // Predicated region
    $region18: #{tpu_custom_call.1} parent=1 // pred_check
      _
    $region19: #{tpu_custom_call.1} parent=1 // pred_check_branch
      %40 = sbr.rel (0) target = $region21
    $region20: #{tpu_custom_call.1} parent=1 // pred_region
      %42 = dma.done [#allocation6], 128
    $region21: #{tpu_custom_call.1} parent=1 // pred_fallthru
      _
    %p43 = scmp.eq.s32.totalorder 0, 0
    // Predicated region
    $region22: #{tpu_custom_call.1} parent=1 // pred_check
      %p44 = pneg %p43
    $region23: #{tpu_custom_call.1} parent=1 // pred_check_branch
      %46 = sbr.rel (%p44) target = $region25
    $region24: #{tpu_custom_call.1} parent=1 // pred_region
      %vm47 = vcmask 0
      %48 = vst.msk [vmem:[#allocation7] sm:$0x1] %vm47, 0.0
    $region25: #{tpu_custom_call.1} parent=1 // pred_fallthru
      _
    %v49 = vld [vmem:[#allocation2] sm:$0xf]
    %v50 = vld [vmem:[#allocation5] sm:$0xff]
    %v51 = vld [vmem:[%s2] sm:$0x1]
    %vm52 = vcmask 261120
    %v54 = vsel %vm52, %v50, 0
    %v57 = vsel %vm52, %v49, 0
    %59 = vmatpush.xpose.msra.mxu0 0.0
    %60 = vmatpush.xpose.msra.mxu0 0.0
    %61 = vmatpush.xpose.msra.mxu0 0.0
    %62 = vmatpush.xpose.msra.mxu0 0.0
    %63 = vmatpush.xpose.msra.mxu0 0.0
    %64 = vmatpush.xpose.msra.mxu0 0.0
    %65 = vmatpush.xpose.msra.mxu0 0.0
    %66 = vmatpush.xpose.msra.mxu0 0.0
    %67 = vmatpush.xpose.msra.mxu0 0.0
    %68 = vmatpush.xpose.msra.mxu0 0.0
    %69 = vmatpush.xpose.msra.mxu0 0.0
    %70 = vmatpush.xpose.msra.mxu0 0.0
    %71 = vmatpush.xpose.msra.mxu0 0.0
    %72 = vmatpush.xpose.msra.mxu0 0.0
    %73 = vmatpush.xpose.msra.mxu0 0.0
    %74 = vmatpush.xpose.msra.mxu0 %v57
    %75 = vmatmul.f32.gmra.mxu0 %v54
    %v76 = vpop.f32.mrf.mxu0
    %v77 = vadd.f32 0.0, %v76
    %78 = vdwg.mxu0
    %v79 = vadd.f32 %v51, 1e-06
    %v80 = vlog2.pop %v79
    %v81 = vmul.f32 %v80, 0.6931472
    %v83 = vperm.slane %v81, 0
    %v85 = vadd.f32 %v77, %v83
    %vm86 = vcmask 31744
    %v87 = vsel %vm86, %v85, -inf
    %88 = vmax.xlane.f32.xlu0 %v87
    %v89 = vpop.xlane.xlu0 %88
    %v90 = vsub.f32 %v85, %v89
    %v91 = vmul.f32 %v90, 1.442695
    %v92 = vpow.pop %v91
    %v93 = vsel %vm86, %v92, 0.0
    %94 = vadd.xlane.f32.xlu0 %v93
    %v95 = vpop.xlane.xlu0 %94
    %v96 = vrcp.pop %v95
    %v97 = vmul.f32 %v92, %v96
    %v98 = vmul.f32 %v50, %v50
    %v99 = vsel %vm52, %v98, 0.0
    %100 = vadd.xlane.f32.xlu0 %v99
    %v101 = vpop.xlane.xlu0 %100
    %v102 = vmax.f32 %v101, 1e-24
    %v103 = vrsqrt.pop %v102
    %v104 = vmul.f32 %v103, %v102
    %v105 = vmul.f32 %v104, %v103
    %v106 = vmul.f32 0.5, %v105
    %v107 = vsub.f32 1.5, %v106
    %v108 = vmul.f32 %v103, %v107
    %vm109 = vweird.f32 %v102
    %vm110 = vweird.f32 %v103
    %vm111 = vmor %vm109, %vm110
    %v112 = vsel %vm111, %v103, %v108
    %v113 = vmul.f32 %v49, %v49
    %vm114 = vcmask 257024
    %v115 = vsel %vm114, %v113, 0.0
    %116 = vadd.xlane.f32.xlu0 %v115
    %v117 = vpop.xlane.xlu0 %116
    %v118 = vmax.f32 %v117, 1e-24
    %v119 = vrsqrt.pop %v118
    %v120 = vmul.f32 %v119, %v118
    %v121 = vmul.f32 %v120, %v119
    %v122 = vmul.f32 0.5, %v121
    %v123 = vsub.f32 1.5, %v122
    %v124 = vmul.f32 %v119, %v123
    %vm125 = vweird.f32 %v118
    %vm126 = vweird.f32 %v119
    %vm127 = vmor %vm125, %vm126
    %v128 = vsel %vm127, %v119, %v124
    %v129 = vmul.f32 %v77, %v112
    %v131 = vlaneseq
    %v132 = vand.u32 %v131, 127
    %v133 = vperm.slane %v128, %v132
    %vm134 = vcmask 1042434
    %v135 = vsel %vm134, %v133, %v133
    %vm136 = vcmask 1043459
    %v137 = vsel %vm136, %v133, %v135
    %vm138 = vcmask 1044484
    %v139 = vsel %vm138, %v133, %v137
    %vm140 = vcmask 1045509
    %v141 = vsel %vm140, %v133, %v139
    %vm142 = vcmask 1046534
    %v143 = vsel %vm142, %v133, %v141
    %vm144 = vcmask 1047559
    %v145 = vsel %vm144, %v133, %v143
    %v147 = vmul.f32 %v129, %v145
    %v148 = vsub.f32 1.0, %v147
    %v149 = vmul.f32 %v148, %v97
    %v150 = vsel %vm86, %v149, 0.0
    %151 = vadd.xlane.f32.xlu0 %v150
    %v152 = vpop.xlane.xlu0 %151
    %v153 = vld [vmem:[#allocation7] sm:$0x1]
    %v154 = vrot.slane %v152, 4
    %v155 = vadd.f32 %v152, %v154
    %v156 = vrot.slane %v155, 2
    %v157 = vadd.f32 %v155, %v156
    %v158 = vrot.slane %v157, 1
    %v159 = vadd.f32 %v157, %v158
    %v160 = vadd.f32 %v153, %v159
    %vm161 = vcmask 0
    %162 = vst.msk [vmem:[#allocation7] sm:$0x1] %vm161, %v160
    // Predicated region
    $region26: #{tpu_custom_call.1} parent=1 // pred_check
      _
    $region27: #{tpu_custom_call.1} parent=1 // pred_check_branch
      %164 = sbr.rel (0) target = $region29
    $region28: #{tpu_custom_call.1} parent=1 // pred_region
      %166 = vsyncadd [#allocation4], 0
      %s168 = sshll.u32 [#allocation7], 4
      %s169 = int_to_ptr.vmem [resolvable:$true] %s168
      %s170 = sshll.u32 %s3, 4
      %s171 = int_to_ptr.hbm [resolvable:$true] %s170
      %173 = dma.vmem_to_hbm [thread:$0]  %s169, 16, %s171, [#allocation4]
    $region29: #{tpu_custom_call.1} parent=1 // pred_fallthru
      _
    // Predicated region
    $region30: #{tpu_custom_call.1} parent=1 // pred_check
      _
    $region31: #{tpu_custom_call.1} parent=1 // pred_check_branch
      %175 = sbr.rel (0) target = $region33
    $region32: #{tpu_custom_call.1} parent=1 // pred_region
      %177 = dma.done [#allocation4], 16
    $region33: #{tpu_custom_call.1} parent=1 // pred_fallthru
      _
    %178 = vsyncpa [#allocation3], 1
    %179 = vsyncpa [#allocation6], 1
    %180 = vsyncpa [#allocation4], 1

</llo_original>
